<compile_context>
chip_gen: v7x
topology: tpu7x:2x2x1
jax: 0.10.0
libtpu: 0.0.40
codegen_flags: <defaults>
</compile_context>

<pallas_src>
import math
import jax
import jax.numpy as jnp
from jax import lax
from jax.experimental import pallas as pl
from jax.experimental.pallas import tpu as pltpu

_INV_SQRT2 = 0.7071067811865476


def _erf(v):
    # Abramowitz & Stegun 7.1.26 rational approximation (|err| < 1.5e-7),
    # matches PyTorch's exact (erf-based) F.gelu to float32 precision.
    a1, a2, a3, a4, a5 = 0.254829592, -0.284496736, 1.421413741, -1.453152027, 1.061405429
    p = 0.3275911
    av = jnp.abs(v)
    t = 1.0 / (1.0 + p * av)
    poly = ((((a5 * t + a4) * t + a3) * t + a2) * t + a1) * t
    y = 1.0 - poly * jnp.exp(-av * av)
    return jnp.where(v >= 0.0, y, -y)


def _sigmoid(v):
    return 1.0 / (1.0 + jnp.exp(-v))


# ---------------------------------------------------------------------------
# Kernel 1: LayerNorm + GELU + input projections (both directions).
# Gridded over row-blocks of the flattened (T*B, D) input -> auto HBM<->VMEM
# pipelining; grid axis is "parallel".
# ---------------------------------------------------------------------------
def _ln_gelu_proj_kernel(x_ref, gamma_ref, beta_ref,
                         wih_f_ref, wih_b_ref, bias_f_ref, bias_b_ref,
                         gxf_ref, gxb_ref):
    x = x_ref[...]                                            # (br, D)
    mean = jnp.mean(x, axis=-1, keepdims=True)
    diff = x - mean
    var = jnp.mean(diff * diff, axis=-1, keepdims=True)       # biased var, eps=1e-5
    xn = diff * lax.rsqrt(var + 1e-5)
    xn = xn * gamma_ref[...] + beta_ref[...]
    g = 0.5 * xn * (1.0 + _erf(xn * _INV_SQRT2))              # exact (erf) GELU
    # Hoisted input projections (one big MXU matmul per direction). Biases
    # already contain b_ih plus the constant b_hh of the r/z gates.
    gxf_ref[...] = (jnp.dot(g, wih_f_ref[...], preferred_element_type=jnp.float32)
                    + bias_f_ref[...])
    gxb_ref[...] = (jnp.dot(g, wih_b_ref[...], preferred_element_type=jnp.float32)
                    + bias_b_ref[...])


# ---------------------------------------------------------------------------
# Kernel 2: fused forward+backward GRU recurrence over the precomputed input
# projections. Per step: one block-diagonal (B,2H)x(2H,6H) recurrent matmul,
# gate math, and lane-slice writes into a single (T, B, 2H) output.
# ---------------------------------------------------------------------------
def _bigru_recurrence_kernel(gxf_ref, gxb_ref, whh_ref, bhhn_ref, out_ref):
    T, B, H3 = gxf_ref.shape
    H = H3 // 3

    whh = whh_ref[...]           # (2H, 6H) block-diag [whh_f^T | whh_b^T]  (hoisted load)
    bhhn = bhhn_ref[...]         # (1, 6H)  zeros except n-gate columns (b_hn must stay inside r*)

    def gates(gx, gh, h):
        # PyTorch gate order r, z, n; r/z h-biases were pre-folded into gx.
        r = _sigmoid(gx[:, 0:H] + gh[:, 0:H])
        z = _sigmoid(gx[:, H:2 * H] + gh[:, H:2 * H])
        n = jnp.tanh(gx[:, 2 * H:3 * H] + r * gh[:, 2 * H:3 * H])
        return (1.0 - z) * n + z * h

    def body(t, carry):
        h_f, h_b = carry
        tb = T - 1 - t
        gxf = gxf_ref[t]                                      # (B, 3H) fwd proj @ time t
        gxb = gxb_ref[tb]                                     # (B, 3H) bwd proj @ time T-1-t
        hcat = jnp.concatenate([h_f, h_b], axis=-1)           # (B, 2H)
        gh = jnp.dot(hcat, whh, preferred_element_type=jnp.float32) + bhhn   # (B, 6H)
        h_f = gates(gxf, gh[:, 0:3 * H], h_f)
        h_b = gates(gxb, gh[:, 3 * H:6 * H], h_b)
        out_ref[t, :, 0:H] = h_f                              # fwd half
        out_ref[tb, :, H:2 * H] = h_b                         # bwd half
        return h_f, h_b

    h0 = jnp.zeros((B, H), jnp.float32)
    # unroll=2 gives the scheduler visibility to interleave the independent
    # fwd/bwd gate math and EUP (exp/tanh) work across adjacent iterations.
    lax.fori_loop(0, T, body, (h0, h0), unroll=2)
    # TODO(synk): dropout is identity in eval/inference; training-time stochastic
    # masking (pltpu.prng_*) intentionally not applied.
    # TODO(synk): on v7x the two directions could be split across the 2 TensorCores
    # (pl.core_map); kept fused here since v5e/v6e have a single TC.


def _pick_row_block(n_rows, max_rows=512):
    """Largest multiple of 8 <= max_rows that divides n_rows (else full array)."""
    best = None
    br = 8
    while br <= min(n_rows, max_rows):
        if n_rows % br == 0:
            best = br
        br += 8
    return best if best is not None else n_rows


def bidirectional_gru(x, params, hidden_size):
    """x: (batch, seq, rnn_dim) float32 -> (batch, seq, 2*hidden_size) float32."""
    B, T, D = x.shape
    H = hidden_size
    f32 = jnp.float32

    # time-major rows: row (t*B + b) is sample (t, b)
    x2 = jnp.transpose(x, (1, 0, 2)).astype(f32).reshape(T * B, D)

    gamma = params["ln_gamma"].astype(f32).reshape(1, D)
    beta = params["ln_beta"].astype(f32).reshape(1, D)

    # pre-transposed input-projection weights (D, 3H), gate order [r | z | n]
    wih_f = params["w_ih_f"].astype(f32).T
    wih_b = params["w_ih_b"].astype(f32).T

    # pre-folded biases: b_ih plus b_hh for the r/z gates (those sums are
    # constant); the n-gate b_hh must remain inside the recurrence (times r).
    def fold_bias(bih, bhh):
        bih = bih.astype(f32)
        bhh = bhh.astype(f32)
        return (bih + jnp.concatenate([bhh[:2 * H], jnp.zeros((H,), f32)])).reshape(1, 3 * H)

    bias_f = fold_bias(params["b_ih_f"], params["b_hh_f"])
    bias_b = fold_bias(params["b_ih_b"], params["b_hh_b"])

    # block-diagonal recurrent weight: concat([h_f, h_b]) @ whh_blk
    #   == [h_f @ whh_f^T | h_b @ whh_b^T]   -> one MXU push per time step
    whh_blk = jnp.zeros((2 * H, 6 * H), f32)
    whh_blk = whh_blk.at[:H, :3 * H].set(params["w_hh_f"].astype(f32).T)
    whh_blk = whh_blk.at[H:, 3 * H:].set(params["w_hh_b"].astype(f32).T)

    bhhn = jnp.zeros((1, 6 * H), f32)
    bhhn = bhhn.at[0, 2 * H:3 * H].set(params["b_hh_f"].astype(f32)[2 * H:])
    bhhn = bhhn.at[0, 5 * H:6 * H].set(params["b_hh_b"].astype(f32)[2 * H:])

    rows = T * B
    br = _pick_row_block(rows)

    gxf, gxb = pl.pallas_call(
        _ln_gelu_proj_kernel,
        out_shape=(jax.ShapeDtypeStruct((rows, 3 * H), f32),
                   jax.ShapeDtypeStruct((rows, 3 * H), f32)),
        grid=(rows // br,),
        in_specs=[
            pl.BlockSpec((br, D), lambda i: (i, 0)),          # x rows
            pl.BlockSpec((1, D), lambda i: (0, 0)),           # gamma
            pl.BlockSpec((1, D), lambda i: (0, 0)),           # beta
            pl.BlockSpec((D, 3 * H), lambda i: (0, 0)),       # wih_f
            pl.BlockSpec((D, 3 * H), lambda i: (0, 0)),       # wih_b
            pl.BlockSpec((1, 3 * H), lambda i: (0, 0)),       # bias_f (folded)
            pl.BlockSpec((1, 3 * H), lambda i: (0, 0)),       # bias_b (folded)
        ],
        out_specs=(pl.BlockSpec((br, 3 * H), lambda i: (i, 0)),
                   pl.BlockSpec((br, 3 * H), lambda i: (i, 0))),
        compiler_params=pltpu.CompilerParams(
            dimension_semantics=("parallel",),
            vmem_limit_bytes=32 * 1024 * 1024),
    )(x2, gamma, beta, wih_f, wih_b, bias_f, bias_b)

    gxf = gxf.reshape(T, B, 3 * H)        # trivial row-major reshape
    gxb = gxb.reshape(T, B, 3 * H)

    vmem = pl.BlockSpec(memory_space=pltpu.MemorySpace.VMEM)
    out = pl.pallas_call(
        _bigru_recurrence_kernel,
        out_shape=jax.ShapeDtypeStruct((T, B, 2 * H), f32),
        in_specs=[vmem, vmem, vmem, vmem],
        out_specs=vmem,
        compiler_params=pltpu.CompilerParams(vmem_limit_bytes=32 * 1024 * 1024),
    )(gxf, gxb, whh_blk, bhhn)

    return jnp.transpose(out, (1, 0, 2))                      # (B, T, 2H) = concat(fwd, bwd)


def init_params(key, rnn_dim, hidden_size):
    """Deterministic init matching PyTorch shapes: GRU weights U(-1/sqrt(H), 1/sqrt(H)),
    LayerNorm gamma=1, beta=0."""
    H, D = hidden_size, rnn_dim
    k = 1.0 / math.sqrt(H)
    ks = jax.random.split(key, 8)
    u = lambda kk, shape: jax.random.uniform(kk, shape, jnp.float32, minval=-k, maxval=k)
    return {
        "ln_gamma": jnp.ones((D,), jnp.float32),
        "ln_beta": jnp.zeros((D,), jnp.float32),
        "w_ih_f": u(ks[0], (3 * H, D)),
        "w_hh_f": u(ks[1], (3 * H, H)),
        "b_ih_f": u(ks[2], (3 * H,)),
        "b_hh_f": u(ks[3], (3 * H,)),
        "w_ih_b": u(ks[4], (3 * H, D)),
        "w_hh_b": u(ks[5], (3 * H, H)),
        "b_ih_b": u(ks[6], (3 * H,)),
        "b_hh_b": u(ks[7], (3 * H,)),
    }


if __name__ == "__main__":
    B, T, D, H = 2, 8, 64, 32      # batch, seq, rnn_dim, hidden_size

    root = jax.random.PRNGKey(0)
    kx, kp = jax.random.split(root)
    x = jax.random.normal(kx, (B, T, D), dtype=jnp.float32)
    params = init_params(kp, D, H)

    out = bidirectional_gru(x, params, H)
    out = jax.block_until_ready(out)

    assert out.shape == (B, T, 2 * H), out.shape
    assert out.dtype == jnp.float32
    assert bool(jnp.all(jnp.isfinite(out)))
    print("KERNEL_OK")
</pallas_src>

<mosaic_0001>
module attributes {stable_mosaic.version = 11 : i64} {
  func.func @_ln_gelu_proj_kernel(%arg0: i32, %arg1: memref<16x64xf32, #tpu.memory_space<vmem>>, %arg2: memref<1x64xf32, #tpu.memory_space<vmem>>, %arg3: memref<1x64xf32, #tpu.memory_space<vmem>>, %arg4: memref<64x96xf32, #tpu.memory_space<vmem>>, %arg5: memref<64x96xf32, #tpu.memory_space<vmem>>, %arg6: memref<1x96xf32, #tpu.memory_space<vmem>>, %arg7: memref<1x96xf32, #tpu.memory_space<vmem>>, %arg8: memref<16x96xf32, #tpu.memory_space<vmem>>, %arg9: memref<16x96xf32, #tpu.memory_space<vmem>>) attributes {dimension_semantics = [#tpu.dimension_semantics<parallel>], iteration_bounds = array<i64: 1>, scalar_prefetch = 0 : i64, scratch_operands = 0 : i64, tpu.core_type = #tpu.core_type<tc>, window_params = [{transform_indices = @transform_0, window_bounds = array<i64: 16, 64>}, {pipeline_mode = #tpu.pipeline_mode<synchronous>, transform_indices = @transform_1, window_bounds = array<i64: 1, 64>}, {pipeline_mode = #tpu.pipeline_mode<synchronous>, transform_indices = @transform_2, window_bounds = array<i64: 1, 64>}, {pipeline_mode = #tpu.pipeline_mode<synchronous>, transform_indices = @transform_3, window_bounds = array<i64: 64, 96>}, {pipeline_mode = #tpu.pipeline_mode<synchronous>, transform_indices = @transform_4, window_bounds = array<i64: 64, 96>}, {pipeline_mode = #tpu.pipeline_mode<synchronous>, transform_indices = @transform_5, window_bounds = array<i64: 1, 96>}, {pipeline_mode = #tpu.pipeline_mode<synchronous>, transform_indices = @transform_6, window_bounds = array<i64: 1, 96>}, {transform_indices = @transform_7, window_bounds = array<i64: 16, 96>}, {transform_indices = @transform_8, window_bounds = array<i64: 16, 96>}]} {
    %c0 = arith.constant 0 : index
    %c0_0 = arith.constant 0 : index
    %0 = vector.load %arg1[%c0, %c0_0] : memref<16x64xf32, #tpu.memory_space<vmem>>, vector<16x64xf32>
    %cst = arith.constant dense<0.000000e+00> : vector<16xf32>
    %1 = vector.multi_reduction <add>, %0, %cst [1] : vector<16x64xf32> to vector<16xf32>
    %2 = vector.shape_cast %1 : vector<16xf32> to vector<16x1xf32>
    %cst_1 = arith.constant 6.400000e+01 : f32
    %3 = vector.broadcast %cst_1 : f32 to vector<16x1xf32>
    %4 = arith.divf %2, %3 : vector<16x1xf32>
    %5 = vector.broadcast %4 : vector<16x1xf32> to vector<16x64xf32>
    %6 = arith.subf %0, %5 : vector<16x64xf32>
    %7 = arith.mulf %6, %6 : vector<16x64xf32>
    %cst_2 = arith.constant dense<0.000000e+00> : vector<16xf32>
    %8 = vector.multi_reduction <add>, %7, %cst_2 [1] : vector<16x64xf32> to vector<16xf32>
    %9 = vector.shape_cast %8 : vector<16xf32> to vector<16x1xf32>
    %cst_3 = arith.constant 6.400000e+01 : f32
    %10 = vector.broadcast %cst_3 : f32 to vector<16x1xf32>
    %11 = arith.divf %9, %10 : vector<16x1xf32>
    %cst_4 = arith.constant 9.99999974E-6 : f32
    %12 = vector.broadcast %cst_4 : f32 to vector<16x1xf32>
    %13 = arith.addf %11, %12 : vector<16x1xf32>
    %14 = math.rsqrt %13 : vector<16x1xf32>
    %15 = vector.broadcast %14 : vector<16x1xf32> to vector<16x64xf32>
    %16 = arith.mulf %6, %15 : vector<16x64xf32>
    %c0_5 = arith.constant 0 : index
    %c0_6 = arith.constant 0 : index
    %17 = vector.load %arg2[%c0_5, %c0_6] : memref<1x64xf32, #tpu.memory_space<vmem>>, vector<1x64xf32>
    %18 = vector.broadcast %17 : vector<1x64xf32> to vector<16x64xf32>
    %19 = arith.mulf %16, %18 : vector<16x64xf32>
    %c0_7 = arith.constant 0 : index
    %c0_8 = arith.constant 0 : index
    %20 = vector.load %arg3[%c0_7, %c0_8] : memref<1x64xf32, #tpu.memory_space<vmem>>, vector<1x64xf32>
    %21 = vector.broadcast %20 : vector<1x64xf32> to vector<16x64xf32>
    %22 = arith.addf %19, %21 : vector<16x64xf32>
    %cst_9 = arith.constant 5.000000e-01 : f32
    %23 = vector.broadcast %cst_9 : f32 to vector<16x64xf32>
    %24 = arith.mulf %23, %22 : vector<16x64xf32>
    %cst_10 = arith.constant 0.707106769 : f32
    %25 = vector.broadcast %cst_10 : f32 to vector<16x64xf32>
    %26 = arith.mulf %22, %25 : vector<16x64xf32>
    %27 = math.absf %26 : vector<16x64xf32>
    %cst_11 = arith.constant 0.327591091 : f32
    %28 = vector.broadcast %cst_11 : f32 to vector<16x64xf32>
    %29 = arith.mulf %28, %27 : vector<16x64xf32>
    %cst_12 = arith.constant 1.000000e+00 : f32
    %30 = vector.broadcast %cst_12 : f32 to vector<16x64xf32>
    %31 = arith.addf %30, %29 : vector<16x64xf32>
    %cst_13 = arith.constant 1.000000e+00 : f32
    %32 = vector.broadcast %cst_13 : f32 to vector<16x64xf32>
    %33 = arith.divf %32, %31 : vector<16x64xf32>
    %cst_14 = arith.constant 1.06140542 : f32
    %34 = vector.broadcast %cst_14 : f32 to vector<16x64xf32>
    %35 = arith.mulf %34, %33 : vector<16x64xf32>
    %cst_15 = arith.constant -1.45315206 : f32
    %36 = vector.broadcast %cst_15 : f32 to vector<16x64xf32>
    %37 = arith.addf %35, %36 : vector<16x64xf32>
    %38 = arith.mulf %37, %33 : vector<16x64xf32>
    %cst_16 = arith.constant 1.42141378 : f32
    %39 = vector.broadcast %cst_16 : f32 to vector<16x64xf32>
    %40 = arith.addf %38, %39 : vector<16x64xf32>
    %41 = arith.mulf %40, %33 : vector<16x64xf32>
    %cst_17 = arith.constant -0.284496725 : f32
    %42 = vector.broadcast %cst_17 : f32 to vector<16x64xf32>
    %43 = arith.addf %41, %42 : vector<16x64xf32>
    %44 = arith.mulf %43, %33 : vector<16x64xf32>
    %cst_18 = arith.constant 0.254829586 : f32
    %45 = vector.broadcast %cst_18 : f32 to vector<16x64xf32>
    %46 = arith.addf %44, %45 : vector<16x64xf32>
    %47 = arith.mulf %46, %33 : vector<16x64xf32>
    %cst_19 = arith.constant 0.000000e+00 : f32
    %48 = vector.broadcast %cst_19 : f32 to vector<16x64xf32>
    %49 = arith.subf %48, %27 : vector<16x64xf32>
    %50 = arith.mulf %49, %27 : vector<16x64xf32>
    %51 = math.exp %50 : vector<16x64xf32>
    %52 = arith.mulf %47, %51 : vector<16x64xf32>
    %cst_20 = arith.constant 1.000000e+00 : f32
    %53 = vector.broadcast %cst_20 : f32 to vector<16x64xf32>
    %54 = arith.subf %53, %52 : vector<16x64xf32>
    %cst_21 = arith.constant 0.000000e+00 : f32
    %55 = vector.broadcast %cst_21 : f32 to vector<16x64xf32>
    %56 = arith.cmpf oge, %26, %55 : vector<16x64xf32>
    %cst_22 = arith.constant 0.000000e+00 : f32
    %57 = vector.broadcast %cst_22 : f32 to vector<16x64xf32>
    %58 = arith.subf %57, %54 : vector<16x64xf32>
    %59 = arith.select %56, %54, %58 : vector<16x64xi1>, vector<16x64xf32>
    %cst_23 = arith.constant 1.000000e+00 : f32
    %60 = vector.broadcast %cst_23 : f32 to vector<16x64xf32>
    %61 = arith.addf %60, %59 : vector<16x64xf32>
    %62 = arith.mulf %24, %61 : vector<16x64xf32>
    %c0_24 = arith.constant 0 : index
    %c0_25 = arith.constant 0 : index
    %63 = vector.load %arg4[%c0_24, %c0_25] : memref<64x96xf32, #tpu.memory_space<vmem>>, vector<64x96xf32>
    %cst_26 = arith.constant dense<0.000000e+00> : vector<16x96xf32>
    %64 = tpu.matmul %62, %63, %cst_26 {dimension_numbers = #tpu.dot_dimension_numbers<[1], [0], [0], [1], [0, 0, 1, 1], [], []>} : vector<16x64xf32>, vector<64x96xf32>, vector<16x96xf32> -> vector<16x96xf32>
    %c0_27 = arith.constant 0 : index
    %c0_28 = arith.constant 0 : index
    %65 = vector.load %arg6[%c0_27, %c0_28] : memref<1x96xf32, #tpu.memory_space<vmem>>, vector<1x96xf32>
    %66 = vector.broadcast %65 : vector<1x96xf32> to vector<16x96xf32>
    %67 = arith.addf %64, %66 : vector<16x96xf32>
    %c0_29 = arith.constant 0 : index
    %c0_30 = arith.constant 0 : index
    %68 = vector.load %arg8[%c0_29, %c0_30] : memref<16x96xf32, #tpu.memory_space<vmem>>, vector<16x96xf32>
    tpu.vector_store %arg8[%c0_29, %c0_30], %67 {strides = array<i32>} : memref<16x96xf32, #tpu.memory_space<vmem>>, vector<16x96xf32>,
    %c0_31 = arith.constant 0 : index
    %c0_32 = arith.constant 0 : index
    %69 = vector.load %arg5[%c0_31, %c0_32] : memref<64x96xf32, #tpu.memory_space<vmem>>, vector<64x96xf32>
    %cst_33 = arith.constant dense<0.000000e+00> : vector<16x96xf32>
    %70 = tpu.matmul %62, %69, %cst_33 {dimension_numbers = #tpu.dot_dimension_numbers<[1], [0], [0], [1], [0, 0, 1, 1], [], []>} : vector<16x64xf32>, vector<64x96xf32>, vector<16x96xf32> -> vector<16x96xf32>
    %c0_34 = arith.constant 0 : index
    %c0_35 = arith.constant 0 : index
    %71 = vector.load %arg7[%c0_34, %c0_35] : memref<1x96xf32, #tpu.memory_space<vmem>>, vector<1x96xf32>
    %72 = vector.broadcast %71 : vector<1x96xf32> to vector<16x96xf32>
    %73 = arith.addf %70, %72 : vector<16x96xf32>
    %c0_36 = arith.constant 0 : index
    %c0_37 = arith.constant 0 : index
    %74 = vector.load %arg9[%c0_36, %c0_37] : memref<16x96xf32, #tpu.memory_space<vmem>>, vector<16x96xf32>
    tpu.vector_store %arg9[%c0_36, %c0_37], %73 {strides = array<i32>} : memref<16x96xf32, #tpu.memory_space<vmem>>, vector<16x96xf32>,
    return
  }
  func.func @transform_0(%arg0: i32) -> (i32, i32) {
    %c0_i32 = arith.constant 0 : i32
    %c0_i32_0 = arith.constant 0 : i32
    return %arg0, %c0_i32 : i32, i32
  }
  func.func @transform_1(%arg0: i32) -> (i32, i32) {
    %c0_i32 = arith.constant 0 : i32
    %c0_i32_0 = arith.constant 0 : i32
    %c0_i32_1 = arith.constant 0 : i32
    return %c0_i32, %c0_i32_0 : i32, i32
  }
  func.func @transform_2(%arg0: i32) -> (i32, i32) {
    %c0_i32 = arith.constant 0 : i32
    %c0_i32_0 = arith.constant 0 : i32
    %c0_i32_1 = arith.constant 0 : i32
    return %c0_i32, %c0_i32_0 : i32, i32
  }
  func.func @transform_3(%arg0: i32) -> (i32, i32) {
    %c0_i32 = arith.constant 0 : i32
    %c0_i32_0 = arith.constant 0 : i32
    %c0_i32_1 = arith.constant 0 : i32
    return %c0_i32, %c0_i32_0 : i32, i32
  }
  func.func @transform_4(%arg0: i32) -> (i32, i32) {
    %c0_i32 = arith.constant 0 : i32
    %c0_i32_0 = arith.constant 0 : i32
    %c0_i32_1 = arith.constant 0 : i32
    return %c0_i32, %c0_i32_0 : i32, i32
  }
  func.func @transform_5(%arg0: i32) -> (i32, i32) {
    %c0_i32 = arith.constant 0 : i32
    %c0_i32_0 = arith.constant 0 : i32
    %c0_i32_1 = arith.constant 0 : i32
    return %c0_i32, %c0_i32_0 : i32, i32
  }
  func.func @transform_6(%arg0: i32) -> (i32, i32) {
    %c0_i32 = arith.constant 0 : i32
    %c0_i32_0 = arith.constant 0 : i32
    %c0_i32_1 = arith.constant 0 : i32
    return %c0_i32, %c0_i32_0 : i32, i32
  }
  func.func @transform_7(%arg0: i32) -> (i32, i32) {
    %c0_i32 = arith.constant 0 : i32
    %c0_i32_0 = arith.constant 0 : i32
    return %arg0, %c0_i32 : i32, i32
  }
  func.func @transform_8(%arg0: i32) -> (i32, i32) {
    %c0_i32 = arith.constant 0 : i32
    %c0_i32_0 = arith.constant 0 : i32
    return %arg0, %c0_i32 : i32, i32
  }
}

</mosaic_0001>

<llo_original>
// kernel: tpu_custom_call.1
$region0: #{tpu_custom_call.1}
  #allocation0 [shape = 'u32[]', space=smem, size = 0x4, offset = 0x4, fixed_abs, tag = 'smem constant byte address 0x4 - core index']
  #allocation1 [shape = 'u32[144,128]{1,0:T(1,128)}', space=vmem, size = 0x12000, scoped, tag = 'internal scratch']
  %s0 = inlined_call_operand.hbm [shape: f32[16,64], index: 0, kind: input, shape index: {}]
  %s1 = inlined_call_operand.vmem [shape: f32[1,64], index: 1, kind: input, shape index: {}]
  %s2 = inlined_call_operand.vmem [shape: f32[1,64], index: 2, kind: input, shape index: {}]
  %s3 = inlined_call_operand.hbm [shape: f32[64,96], index: 3, kind: input, shape index: {}]
  %s4 = inlined_call_operand.hbm [shape: f32[64,96], index: 4, kind: input, shape index: {}]
  %s5 = inlined_call_operand.vmem [shape: f32[1,96], index: 5, kind: input, shape index: {}]
  %s6 = inlined_call_operand.vmem [shape: f32[1,96], index: 6, kind: input, shape index: {}]
  %s7 = inlined_call_operand.hbm [shape: f32[16,96], index: 7, kind: output, shape index: {0}]
  %s8 = inlined_call_operand.hbm [shape: f32[16,96], index: 8, kind: output, shape index: {1}]
  %9 = xla_tuple %s7, %s8
  %s10 = sld [smem:[#allocation0]]
  $region58: #{tpu_custom_call.1} parent=0
    _
  %s12 = ssub.s32 1, %s10
  %s13 = scalar_select 0, %s12, %s10
  $region1: #{tpu_custom_call.1} parent=0
    #allocation2 [shape = 'u8[8192]{0}', space=vmem, size = 0x2000, scoped, tag = 'input window, operand 0, single buffered']
    #allocation3 [shape = 's32[1]{0}', space=sflag, size = 0x4, scoped, tag = 'scoped memory for tpu_custom_call.1']
    #allocation4 [shape = 's32[1]{0}', space=sflag, size = 0x4, scoped, tag = 'scoped memory for tpu_custom_call.1']
    #allocation5 [shape = 'u8[32768]{0}', space=vmem, size = 0x8000, scoped, tag = 'input window, operand 3, single buffered']
    #allocation6 [shape = 's32[1]{0}', space=sflag, size = 0x4, scoped, tag = 'scoped memory for tpu_custom_call.1']
    #allocation7 [shape = 'u8[32768]{0}', space=vmem, size = 0x8000, scoped, tag = 'input window, operand 4, single buffered']
    #allocation8 [shape = 'u8[8192]{0}', space=vmem, size = 0x2000, scoped, tag = 'output window, operand 0, single buffered']
    #allocation9 [shape = 'u8[8192]{0}', space=vmem, size = 0x2000, scoped, tag = 'output window, operand 1, single buffered']
    #allocation10 [shape = 's32[1]{0}', space=sflag, size = 0x4, scoped, tag = 'scoped memory for tpu_custom_call.1']
    %14 = vsyncpa [#allocation3], 0
    %15 = vsyncpa [#allocation6], 0
    %16 = vsyncpa [#allocation4], 0
    %17 = vsyncpa [#allocation10], 0
    // Predicated region
    $region2: #{tpu_custom_call.1} parent=1 // pred_check
      _
    $region3: #{tpu_custom_call.1} parent=1 // pred_check_branch
      %19 = sbr.rel (0) target = $region5
    $region4: #{tpu_custom_call.1} parent=1 // pred_region
      %s21 = ssub.s32 256, 256
      %22 = vsyncadd [#allocation3], %s21
      %s23 = sshll.u32 [#allocation2], 4
      %s24 = int_to_ptr.vmem [resolvable:$true] %s23
      %29 = dma.hbm_to_vmem [thread:$0]  %s0, 256, %s24, [#allocation3], 128, 128, 8
    $region5: #{tpu_custom_call.1} parent=1 // pred_fallthru
      _
    // Predicated region
    $region6: #{tpu_custom_call.1} parent=1 // pred_check
      _
    $region7: #{tpu_custom_call.1} parent=1 // pred_check_branch
      %31 = sbr.rel (0) target = $region9
    $region8: #{tpu_custom_call.1} parent=1 // pred_region
      _
    $region9: #{tpu_custom_call.1} parent=1 // pred_fallthru
      _
    // Predicated region
    $region10: #{tpu_custom_call.1} parent=1 // pred_check
      _
    $region11: #{tpu_custom_call.1} parent=1 // pred_check_branch
      %33 = sbr.rel (0) target = $region13
    $region12: #{tpu_custom_call.1} parent=1 // pred_region
      _
    $region13: #{tpu_custom_call.1} parent=1 // pred_fallthru
      _
    // Predicated region
    $region14: #{tpu_custom_call.1} parent=1 // pred_check
      _
    $region15: #{tpu_custom_call.1} parent=1 // pred_check_branch
      %35 = sbr.rel (0) target = $region17
    $region16: #{tpu_custom_call.1} parent=1 // pred_region
      %s37 = ssub.s32 1024, 1024
      %38 = vsyncadd [#allocation6], %s37
      %s39 = sshll.u32 [#allocation5], 4
      %s40 = int_to_ptr.vmem [resolvable:$true] %s39
      %45 = dma.hbm_to_vmem [thread:$0]  %s3, 1024, %s40, [#allocation6], 128, 128, 8
    $region17: #{tpu_custom_call.1} parent=1 // pred_fallthru
      _
    // Predicated region
    $region18: #{tpu_custom_call.1} parent=1 // pred_check
      _
    $region19: #{tpu_custom_call.1} parent=1 // pred_check_branch
      %47 = sbr.rel (0) target = $region21
    $region20: #{tpu_custom_call.1} parent=1 // pred_region
      %s49 = ssub.s32 1024, 1024
      %50 = vsyncadd [#allocation6], %s49
      %s51 = sshll.u32 [#allocation7], 4
      %s52 = int_to_ptr.vmem [resolvable:$true] %s51
      %57 = dma.hbm_to_vmem [thread:$0]  %s4, 1024, %s52, [#allocation6], 128, 128, 8
    $region21: #{tpu_custom_call.1} parent=1 // pred_fallthru
      _
    // Predicated region
    $region22: #{tpu_custom_call.1} parent=1 // pred_check
      _
    $region23: #{tpu_custom_call.1} parent=1 // pred_check_branch
      %59 = sbr.rel (0) target = $region25
    $region24: #{tpu_custom_call.1} parent=1 // pred_region
      _
    $region25: #{tpu_custom_call.1} parent=1 // pred_fallthru
      _
    // Predicated region
    $region26: #{tpu_custom_call.1} parent=1 // pred_check
      _
    $region27: #{tpu_custom_call.1} parent=1 // pred_check_branch
      %61 = sbr.rel (0) target = $region29
    $region28: #{tpu_custom_call.1} parent=1 // pred_region
      _
    $region29: #{tpu_custom_call.1} parent=1 // pred_fallthru
      _
    // Predicated region
    $region30: #{tpu_custom_call.1} parent=1 // pred_check
      _
    $region31: #{tpu_custom_call.1} parent=1 // pred_check_branch
      %63 = sbr.rel (0) target = $region33
    $region32: #{tpu_custom_call.1} parent=1 // pred_region
      %64 = dma.done [#allocation3], 256
    $region33: #{tpu_custom_call.1} parent=1 // pred_fallthru
      _
    // Predicated region
    $region34: #{tpu_custom_call.1} parent=1 // pred_check
      _
    $region35: #{tpu_custom_call.1} parent=1 // pred_check_branch
      %66 = sbr.rel (0) target = $region37
    $region36: #{tpu_custom_call.1} parent=1 // pred_region
      %67 = dma.done [#allocation6], 1024
    $region37: #{tpu_custom_call.1} parent=1 // pred_fallthru
      _
    // Predicated region
    $region38: #{tpu_custom_call.1} parent=1 // pred_check
      _
    $region39: #{tpu_custom_call.1} parent=1 // pred_check_branch
      %69 = sbr.rel (0) target = $region41
    $region40: #{tpu_custom_call.1} parent=1 // pred_region
      %70 = dma.done [#allocation6], 1024
    $region41: #{tpu_custom_call.1} parent=1 // pred_fallthru
      _
    %v71 = vld [vmem:[#allocation2] sm:$0xff]
    %v72 = vld [vmem:[#allocation2 + $0x8] sm:$0xff]
    %vm73 = vcmask 523264
    %v74 = vsel %vm73, %v71, 0.0
    %75 = vadd.xlane.f32.xlu0 %v74
    %v76 = vpop.xlane.xlu0 %75
    %v77 = vsel %vm73, %v72, 0.0
    %78 = vadd.xlane.f32.xlu0 %v77
    %v79 = vpop.xlane.xlu0 %78
    %v80 = vrcp.pop 64.0
    %v81 = vmul.f32 %v76, %v80
    %v82 = vmul.f32 %v79, %v80
    %v83 = vsub.f32 %v71, %v81
    %v84 = vsub.f32 %v72, %v82
    %v85 = vmul.f32 %v83, %v83
    %v86 = vmul.f32 %v84, %v84
    %v87 = vsel %vm73, %v85, 0.0
    %88 = vadd.xlane.f32.xlu0 %v87
    %v89 = vpop.xlane.xlu0 %88
    %v90 = vsel %vm73, %v86, 0.0
    %91 = vadd.xlane.f32.xlu0 %v90
    %v92 = vpop.xlane.xlu0 %91
    %v93 = vmul.f32 %v89, %v80
    %v94 = vmul.f32 %v92, %v80
    %v95 = vadd.f32 %v93, 1e-05
    %v96 = vadd.f32 %v94, 1e-05
    %v97 = vrsqrt.pop %v95
    %v98 = vrsqrt.pop %v96
    %v99 = vmul.f32 %v83, %v97
    %v100 = vmul.f32 %v84, %v98
    %v101 = vld [vmem:[%s1] sm:$0x1]
    %v103 = vlaneseq
    %v104 = vshrl.u32 %v103, 7
    %v105 = vsub.s32 0, %v104
    %v106 = vrot.slane %v101, %v105
    %v108 = vmul.f32 %v99, %v106
    %v109 = vmul.f32 %v100, %v106
    %v110 = vld [vmem:[%s2] sm:$0x1]
    %v112 = vlaneseq
    %v113 = vshrl.u32 %v112, 7
    %v114 = vsub.s32 0, %v113
    %v115 = vrot.slane %v110, %v114
    %v117 = vadd.f32 %v108, %v115
    %v118 = vadd.f32 %v109, %v115
    %v119 = vmul.f32 %v117, 0.5
    %v120 = vmul.f32 %v118, 0.5
    %v121 = vmul.f32 %v117, 0.70710677
    %v122 = vmul.f32 %v118, 0.70710677
    %v123 = vand.u32 2147483647, %v121
    %v124 = vand.u32 2147483647, %v122
    %v125 = vmul.f32 %v123, 0.3275911
    %v126 = vmul.f32 %v124, 0.3275911
    %v127 = vadd.f32 %v125, 1.0
    %v128 = vadd.f32 %v126, 1.0
    %v129 = vrcp.pop %v127
    %v130 = vmul.f32 1.0, %v129
    %v131 = vrcp.pop %v128
    %v132 = vmul.f32 1.0, %v131
    %v133 = vmul.f32 %v130, 1.0614054
    %v134 = vmul.f32 %v132, 1.0614054
    %v135 = vadd.f32 %v133, -1.4531521
    %v136 = vadd.f32 %v134, -1.4531521
    %v137 = vmul.f32 %v135, %v130
    %v138 = vmul.f32 %v136, %v132
    %v139 = vadd.f32 %v137, 1.4214138
    %v140 = vadd.f32 %v138, 1.4214138
    %v141 = vmul.f32 %v139, %v130
    %v142 = vmul.f32 %v140, %v132
    %v143 = vadd.f32 %v141, -0.28449672
    %v144 = vadd.f32 %v142, -0.28449672
    %v145 = vmul.f32 %v143, %v130
    %v146 = vmul.f32 %v144, %v132
    %v147 = vadd.f32 %v145, 0.2548296
    %v148 = vadd.f32 %v146, 0.2548296
    %v149 = vmul.f32 %v147, %v130
    %v150 = vmul.f32 %v148, %v132
    %v151 = vsub.f32 0.0, %v123
    %v152 = vsub.f32 0.0, %v124
    %v153 = vmul.f32 %v151, %v123
    %v154 = vmul.f32 %v152, %v124
    %v155 = vmul.f32 %v153, 1.442695
    %v156 = vpow.pop %v155
    %v157 = vmul.f32 %v154, 1.442695
    %v158 = vpow.pop %v157
    %v159 = vmul.f32 %v149, %v156
    %v160 = vmul.f32 %v150, %v158
    %v161 = vsub.f32 1.0, %v159
    %v162 = vsub.f32 1.0, %v160
    %vm163 = vcmp.ge.f32.partialorder %v121, 0.0
    %vm164 = vcmp.ge.f32.partialorder %v122, 0.0
    %v165 = vsub.f32 0.0, %v161
    %v166 = vsub.f32 0.0, %v162
    %v167 = vsel %vm163, %v161, %v165
    %v168 = vsel %vm164, %v162, %v166
    %v169 = vadd.f32 %v167, 1.0
    %v170 = vadd.f32 %v168, 1.0
    %v171 = vmul.f32 %v119, %v169
    %v172 = vmul.f32 %v120, %v170
    %v173 = vld [vmem:[#allocation5] sm:$0xff]
    %v174 = vld [vmem:[#allocation5 + $0x8] sm:$0xff]
    %v175 = vld [vmem:[#allocation5 + $0x10] sm:$0xff]
    %v176 = vld [vmem:[#allocation5 + $0x18] sm:$0xff]
    %v177 = vld [vmem:[#allocation5 + $0x20] sm:$0xff]
    %v178 = vld [vmem:[#allocation5 + $0x28] sm:$0xff]
    %v179 = vld [vmem:[#allocation5 + $0x30] sm:$0xff]
    %v180 = vld [vmem:[#allocation5 + $0x38] sm:$0xff]
    %v181 = vld [vmem:[%s5] sm:$0x1]
    %v183 = vlaneseq
    %v184 = vshrl.u32 %v183, 7
    %v185 = vsub.s32 0, %v184
    %v186 = vrot.slane %v181, %v185
    %v189 = vsel %vm73, %v171, 0
    %v192 = vsel %vm73, %v172, 0
    %194 = vmatprep.subr.mxu0 0.0
    %195 = vmatpush1.msra.mxu0 %v173
    %196 = vmatprep.subr.mxu0 0.0
    %197 = vmatpush1.msra.mxu0 %v174
    %198 = vmatprep.subr.mxu0 0.0
    %199 = vmatpush1.msra.mxu0 %v175
    %200 = vmatprep.subr.mxu0 0.0
    %201 = vmatpush1.msra.mxu0 %v176
    %202 = vmatprep.subr.mxu0 0.0
    %203 = vmatpush1.msra.mxu0 %v177
    %204 = vmatprep.subr.mxu0 0.0
    %205 = vmatpush1.msra.mxu0 %v178
    %206 = vmatprep.subr.mxu0 0.0
    %207 = vmatpush1.msra.mxu0 %v179
    %208 = vmatprep.subr.mxu0 0.0
    %209 = vmatpush1.msra.mxu0 %v180
    %210 = vmatprep.subr.mxu0 0.0
    %211 = vmatpush1.msra.mxu0 0.0
    %212 = vmatprep.subr.mxu0 0.0
    %213 = vmatpush1.msra.mxu0 0.0
    %214 = vmatprep.subr.mxu0 0.0
    %215 = vmatpush1.msra.mxu0 0.0
    %216 = vmatprep.subr.mxu0 0.0
    %217 = vmatpush1.msra.mxu0 0.0
    %218 = vmatprep.subr.mxu0 0.0
    %219 = vmatpush1.msra.mxu0 0.0
    %220 = vmatprep.subr.mxu0 0.0
    %221 = vmatpush1.msra.mxu0 0.0
    %222 = vmatprep.subr.mxu0 0.0
    %223 = vmatpush1.msra.mxu0 0.0
    %224 = vmatprep.subr.mxu0 0.0
    %225 = vmatpush1.msra.mxu0 0.0
    %226 = vmatprep.subr.mxu0 0.0
    %227 = vmatpush1.msra.mxu0 0.0
    %228 = vmatprep.subr.mxu0 0.0
    %229 = vmatpush1.msra.mxu0 0.0
    %230 = vmatprep.subr.mxu0 0.0
    %231 = vmatpush1.msra.mxu0 0.0
    %232 = vmatprep.subr.mxu0 0.0
    %233 = vmatpush1.msra.mxu0 0.0
    %234 = vmatprep.subr.mxu0 0.0
    %235 = vmatpush1.msra.mxu0 0.0
    %236 = vmatprep.subr.mxu0 0.0
    %237 = vmatpush1.msra.mxu0 0.0
    %238 = vmatprep.subr.mxu0 0.0
    %239 = vmatpush1.msra.mxu0 0.0
    %240 = vmatprep.subr.mxu0 0.0
    %241 = vmatpush1.msra.mxu0 0.0
    %242 = vmatprep.subr.mxu0 0.0
    %243 = vmatpush1.msra.mxu0 0.0
    %244 = vmatprep.subr.mxu0 0.0
    %245 = vmatpush1.msra.mxu0 0.0
    %246 = vmatprep.subr.mxu0 0.0
    %247 = vmatpush1.msra.mxu0 0.0
    %248 = vmatprep.subr.mxu0 0.0
    %249 = vmatpush1.msra.mxu0 0.0
    %250 = vmatprep.subr.mxu0 0.0
    %251 = vmatpush1.msra.mxu0 0.0
    %252 = vmatprep.subr.mxu0 0.0
    %253 = vmatpush1.msra.mxu0 0.0
    %254 = vmatprep.subr.mxu0 0.0
    %255 = vmatpush1.msra.mxu0 0.0
    %256 = vmatprep.subr.mxu0 0.0
    %257 = vmatpush1.msra.mxu0 0.0
    %258 = vmatprep.mubr.f32.mxu0 0.0
    %259 = vmatmul.mubr.f32.gmra.mrb[0].mxu0 %v189
    %v260 = vpop.f32.mrb[0].mxu0
    %v261 = vadd.f32 %v186, %v260
    %v262 = vpop.f32.mrb[0].mxu0
    %263 = vmatprep.mubr.f32.mxu0 0.0
    %264 = vmatmul.mubr.f32.gmra.mrb[0].mxu0 %v192
    %v265 = vpop.f32.mrb[0].mxu0
    %v266 = vadd.f32 %v186, %v265
    %v267 = vpop.f32.mrb[0].mxu0
    %268 = vdwg.mxu0
    %vm269 = vcmask 785408
    %270 = vst.msk [vmem:[#allocation8] sm:$0xff] %vm269, %v261
    %271 = vst.msk [vmem:[#allocation8 + $0x8] sm:$0xff] %vm269, %v266
    %v272 = vld [vmem:[#allocation7] sm:$0xff]
    %v273 = vld [vmem:[#allocation7 + $0x8] sm:$0xff]
    %v274 = vld [vmem:[#allocation7 + $0x10] sm:$0xff]
    %v275 = vld [vmem:[#allocation7 + $0x18] sm:$0xff]
    %v276 = vld [vmem:[#allocation7 + $0x20] sm:$0xff]
    %v277 = vld [vmem:[#allocation7 + $0x28] sm:$0xff]
    %v278 = vld [vmem:[#allocation7 + $0x30] sm:$0xff]
    %v279 = vld [vmem:[#allocation7 + $0x38] sm:$0xff]
    %v280 = vld [vmem:[%s6] sm:$0x1]
    %v282 = vlaneseq
    %v283 = vshrl.u32 %v282, 7
    %v284 = vsub.s32 0, %v283
    %v285 = vrot.slane %v280, %v284
    %287 = vmatprep.subr.mxu0 0.0
    %288 = vmatpush1.msra.mxu0 %v272
    %289 = vmatprep.subr.mxu0 0.0
    %290 = vmatpush1.msra.mxu0 %v273
    %291 = vmatprep.subr.mxu0 0.0
    %292 = vmatpush1.msra.mxu0 %v274
    %293 = vmatprep.subr.mxu0 0.0
    %294 = vmatpush1.msra.mxu0 %v275
    %295 = vmatprep.subr.mxu0 0.0
    %296 = vmatpush1.msra.mxu0 %v276
    %297 = vmatprep.subr.mxu0 0.0
    %298 = vmatpush1.msra.mxu0 %v277
    %299 = vmatprep.subr.mxu0 0.0
    %300 = vmatpush1.msra.mxu0 %v278
    %301 = vmatprep.subr.mxu0 0.0
    %302 = vmatpush1.msra.mxu0 %v279
    %303 = vmatprep.subr.mxu0 0.0
    %304 = vmatpush1.msra.mxu0 0.0
    %305 = vmatprep.subr.mxu0 0.0
    %306 = vmatpush1.msra.mxu0 0.0
    %307 = vmatprep.subr.mxu0 0.0
    %308 = vmatpush1.msra.mxu0 0.0
    %309 = vmatprep.subr.mxu0 0.0
    %310 = vmatpush1.msra.mxu0 0.0
    %311 = vmatprep.subr.mxu0 0.0
    %312 = vmatpush1.msra.mxu0 0.0
    %313 = vmatprep.subr.mxu0 0.0
    %314 = vmatpush1.msra.mxu0 0.0
    %315 = vmatprep.subr.mxu0 0.0
    %316 = vmatpush1.msra.mxu0 0.0
    %317 = vmatprep.subr.mxu0 0.0
    %318 = vmatpush1.msra.mxu0 0.0
    %319 = vmatprep.subr.mxu0 0.0
    %320 = vmatpush1.msra.mxu0 0.0
    %321 = vmatprep.subr.mxu0 0.0
    %322 = vmatpush1.msra.mxu0 0.0
    %323 = vmatprep.subr.mxu0 0.0
    %324 = vmatpush1.msra.mxu0 0.0
    %325 = vmatprep.subr.mxu0 0.0
    %326 = vmatpush1.msra.mxu0 0.0
    %327 = vmatprep.subr.mxu0 0.0
    %328 = vmatpush1.msra.mxu0 0.0
    %329 = vmatprep.subr.mxu0 0.0
    %330 = vmatpush1.msra.mxu0 0.0
    %331 = vmatprep.subr.mxu0 0.0
    %332 = vmatpush1.msra.mxu0 0.0
    %333 = vmatprep.subr.mxu0 0.0
    %334 = vmatpush1.msra.mxu0 0.0
    %335 = vmatprep.subr.mxu0 0.0
    %336 = vmatpush1.msra.mxu0 0.0
    %337 = vmatprep.subr.mxu0 0.0
    %338 = vmatpush1.msra.mxu0 0.0
    %339 = vmatprep.subr.mxu0 0.0
    %340 = vmatpush1.msra.mxu0 0.0
    %341 = vmatprep.subr.mxu0 0.0
    %342 = vmatpush1.msra.mxu0 0.0
    %343 = vmatprep.subr.mxu0 0.0
    %344 = vmatpush1.msra.mxu0 0.0
    %345 = vmatprep.subr.mxu0 0.0
    %346 = vmatpush1.msra.mxu0 0.0
    %347 = vmatprep.subr.mxu0 0.0
    %348 = vmatpush1.msra.mxu0 0.0
    %349 = vmatprep.subr.mxu0 0.0
    %350 = vmatpush1.msra.mxu0 0.0
    %351 = vmatprep.mubr.f32.mxu0 0.0
    %352 = vmatmul.mubr.f32.gmra.mrb[0].mxu0 %v189
    %v353 = vpop.f32.mrb[0].mxu0
    %v354 = vadd.f32 %v285, %v353
    %v355 = vpop.f32.mrb[0].mxu0
    %356 = vmatprep.mubr.f32.mxu0 0.0
    %357 = vmatmul.mubr.f32.gmra.mrb[0].mxu0 %v192
    %v358 = vpop.f32.mrb[0].mxu0
    %v359 = vadd.f32 %v285, %v358
    %v360 = vpop.f32.mrb[0].mxu0
    %361 = vdwg.mxu0
    %362 = vst.msk [vmem:[#allocation9] sm:$0xff] %vm269, %v354
    %363 = vst.msk [vmem:[#allocation9 + $0x8] sm:$0xff] %vm269, %v359
    // Predicated region
    $region42: #{tpu_custom_call.1} parent=1 // pred_check
      _
    $region43: #{tpu_custom_call.1} parent=1 // pred_check_branch
      %365 = sbr.rel (0) target = $region45
    $region44: #{tpu_custom_call.1} parent=1 // pred_region
      %s367 = ssub.s32 256, 256
      %368 = vsyncadd [#allocation4], %s367
      %s369 = sshll.u32 [#allocation8], 4
      %s370 = int_to_ptr.vmem [resolvable:$true] %s369
      %375 = dma.vmem_to_hbm [thread:$0]  %s370, 256, %s7, [#allocation4], 128, 128, 8
    $region45: #{tpu_custom_call.1} parent=1 // pred_fallthru
      _
    // Predicated region
    $region46: #{tpu_custom_call.1} parent=1 // pred_check
      _
    $region47: #{tpu_custom_call.1} parent=1 // pred_check_branch
      %377 = sbr.rel (0) target = $region49
    $region48: #{tpu_custom_call.1} parent=1 // pred_region
      %s379 = ssub.s32 256, 256
      %380 = vsyncadd [#allocation10], %s379
      %s381 = sshll.u32 [#allocation9], 4
      %s382 = int_to_ptr.vmem [resolvable:$true] %s381
      %387 = dma.vmem_to_hbm [thread:$0]  %s382, 256, %s8, [#allocation10], 128, 128, 8
    $region49: #{tpu_custom_call.1} parent=1 // pred_fallthru
      _
    // Predicated region
    $region50: #{tpu_custom_call.1} parent=1 // pred_check
      _
    $region51: #{tpu_custom_call.1} parent=1 // pred_check_branch
      %389 = sbr.rel (0) target = $region53
    $region52: #{tpu_custom_call.1} parent=1 // pred_region
      %390 = dma.done [#allocation4], 256
    $region53: #{tpu_custom_call.1} parent=1 // pred_fallthru
      _
    // Predicated region
    $region54: #{tpu_custom_call.1} parent=1 // pred_check
      _
    $region55: #{tpu_custom_call.1} parent=1 // pred_check_branch
      %392 = sbr.rel (0) target = $region57
    $region56: #{tpu_custom_call.1} parent=1 // pred_region
      %393 = dma.done [#allocation10], 256
    $region57: #{tpu_custom_call.1} parent=1 // pred_fallthru
      _
    %394 = vsyncpa [#allocation3], 1
    %395 = vsyncpa [#allocation6], 1
    %396 = vsyncpa [#allocation4], 1
    %397 = vsyncpa [#allocation10], 1

</llo_original>
